<compile_context>
chip_gen: v7x
topology: tpu7x:2x2x1
jax: 0.10.0
libtpu: 0.0.40
codegen_flags: <defaults>
</compile_context>

<pallas_src>
import functools

import jax
import jax.numpy as jnp
from jax.experimental import pallas as pl
from jax.experimental.pallas import tpu as pltpu


# ----------------------------------------------------------------------------
# VMEM budgeting (generation-aware, conservative fallback = v7x 64 MiB).
# ----------------------------------------------------------------------------
def _vmem_params():
    cap = 64 * 1024 * 1024  # smallest per-TC VMEM across generations (v7x)
    try:
        info_cap = int(pltpu.get_tpu_info().vmem_capacity_bytes)
        if info_cap > 0:
            cap = info_cap
    except Exception:
        pass
    limit = min(int(cap * 0.78), cap - 8 * 1024 * 1024)   # headroom for Mosaic
    budget = int(cap * 0.60)                               # pipeline tiles+temps
    return budget, limit


_VMEM_TILE_BUDGET, _VMEM_LIMIT_BYTES = _vmem_params()
_MAX_TILE_ROWS = 4096
_MIN_GRID_STEPS = 8     # keep the row grid >= this many steps when rows allow


def _round_up(x, m):
    return ((x + m - 1) // m) * m


def _sublane(itemsize):
    # Sublane packing: f32 -> 8, bf16/f16 -> 16, int8/fp8 -> 32.
    return {4: 8, 2: 16, 1: 32}.get(itemsize, 8)


def _pick_tile_rows(rows, vocab, in_itemsize, out_itemsize, log_probs):
    """Largest dtype-aligned row tile whose pipeline buffers fit the budget.

    Returns None when even a sublane-height tile does not fit (very large
    vocab) -> caller falls back to the vocab-chunked two-pass path.
    """
    sub = _sublane(in_itemsize)
    # Per row of tile: double-buffered input + output tiles plus live f32
    # temporaries (2 for softmax: x, e; 3 for log-softmax: x, shifted, exp).
    n_f32_temps = 3 if log_probs else 2
    per_row = (2 * vocab * in_itemsize
               + 2 * vocab * out_itemsize
               + n_f32_temps * 4 * vocab)
    tm = _VMEM_TILE_BUDGET // max(per_row, 1)
    if tm < sub:
        return None
    tm = (tm // sub) * sub
    tm = min(tm, _MAX_TILE_ROWS)
    rows_rounded = _round_up(rows, sub)
    tm = min(tm, rows_rounded)
    # Keep >= _MIN_GRID_STEPS grid steps when rows allow: restores v7x megacore
    # sharding and gives the DMA pipeline something to overlap.
    tm_for_steps = _round_up(pl.cdiv(rows, _MIN_GRID_STEPS), sub)
    tm = max(sub, min(tm, tm_for_steps))
    return tm


def _pick_chunked_tiles(rows, vocab, in_itemsize, out_itemsize):
    sub = _sublane(in_itemsize)
    tm = max(sub, min(128, _round_up(rows, sub)))
    per_elem = 2 * in_itemsize + 2 * out_itemsize + 8   # dbl-buf I/O + f32 temps
    tv = _VMEM_TILE_BUDGET // max(tm * per_elem, 1)
    tv = max(128, (tv // 128) * 128)
    tv = min(tv, _round_up(vocab, 128))
    return tm, tv


# ----------------------------------------------------------------------------
# Single-pass kernels: whole vocab row resident in VMEM.
# ----------------------------------------------------------------------------
def _softmax_kernel(x_ref, o_ref):
    # Numerically-stable softmax over the last axis of a (TM, V) tile.
    x = x_ref[...].astype(jnp.float32)
    m = jnp.max(x, axis=-1, keepdims=True)
    e = jnp.exp(x - m)
    s = jnp.sum(e, axis=-1, keepdims=True)
    o_ref[...] = (e / s).astype(o_ref.dtype)     # exact divide: rows sum to 1


def _log_softmax_kernel(x_ref, o_ref):
    # Numerically-stable log-softmax over the last axis of a (TM, V) tile.
    x = x_ref[...].astype(jnp.float32)
    shifted = x - jnp.max(x, axis=-1, keepdims=True)
    lse = jnp.log(jnp.sum(jnp.exp(shifted), axis=-1, keepdims=True))
    o_ref[...] = (shifted - lse).astype(o_ref.dtype)


# ----------------------------------------------------------------------------
# Vocab-chunked fallback (very large V): pass 1 computes per-row logsumexp with
# an online max/sum accumulator; pass 2 applies the normalization per chunk.
# ----------------------------------------------------------------------------
def _row_lse_kernel(x_ref, lse_ref, m_acc, l_acc, *, vocab):
    j = pl.program_id(1)

    @pl.when(j == 0)
    def _():
        m_acc[...] = jnp.full(m_acc.shape, -jnp.inf, m_acc.dtype)
        l_acc[...] = jnp.zeros(l_acc.shape, l_acc.dtype)

    x = x_ref[...].astype(jnp.float32)
    tm, tv = x.shape
    # Mask vocab-tail padding of the last chunk so it can't poison the row
    # reduction (padded reads are unspecified).
    col = jax.lax.broadcasted_iota(jnp.int32, (tm, tv), 1) + j * tv
    x = jnp.where(col < vocab, x, -jnp.inf)

    m_new = jnp.maximum(m_acc[...], jnp.max(x, axis=-1, keepdims=True))
    scale = jnp.exp(m_acc[...] - m_new)
    l_acc[...] = scale * l_acc[...] + jnp.sum(jnp.exp(x - m_new),
                                              axis=-1, keepdims=True)
    m_acc[...] = m_new

    @pl.when(j == pl.num_programs(1) - 1)
    def _():
        lse_ref[...] = m_acc[...] + jnp.log(l_acc[...])


def _softmax_apply_kernel(x_ref, lse_ref, o_ref):
    x = x_ref[...].astype(jnp.float32)
    o_ref[...] = jnp.exp(x - lse_ref[...]).astype(o_ref.dtype)


def _log_softmax_apply_kernel(x_ref, lse_ref, o_ref):
    x = x_ref[...].astype(jnp.float32)
    o_ref[...] = (x - lse_ref[...]).astype(o_ref.dtype)


def _normalized_probs_chunked(x2d, log_probs, out_dtype, tm, tv):
    rows, v = x2d.shape
    n_i = pl.cdiv(rows, tm)
    n_j = pl.cdiv(v, tv)

    lse = pl.pallas_call(
        functools.partial(_row_lse_kernel, vocab=v),
        out_shape=jax.ShapeDtypeStruct((rows, 1), jnp.float32),
        grid_spec=pltpu.PrefetchScalarGridSpec(
            num_scalar_prefetch=0,
            grid=(n_i, n_j),
            in_specs=[pl.BlockSpec((tm, tv), lambda i, j: (i, j))],
            out_specs=pl.BlockSpec((tm, 1), lambda i, j: (i, 0)),
            scratch_shapes=[pltpu.VMEM((tm, 1), jnp.float32),
                            pltpu.VMEM((tm, 1), jnp.float32)],
        ),
        compiler_params=pltpu.CompilerParams(
            dimension_semantics=("parallel", "arbitrary"),
            vmem_limit_bytes=_VMEM_LIMIT_BYTES,
        ),
    )(x2d)

    apply_kernel = _log_softmax_apply_kernel if log_probs else _softmax_apply_kernel
    out2d = pl.pallas_call(
        apply_kernel,
        out_shape=jax.ShapeDtypeStruct((rows, v), out_dtype),
        grid_spec=pltpu.PrefetchScalarGridSpec(
            num_scalar_prefetch=0,
            grid=(n_i, n_j),
            in_specs=[pl.BlockSpec((tm, tv), lambda i, j: (i, j)),
                      pl.BlockSpec((tm, 1), lambda i, j: (i, 0))],
            out_specs=pl.BlockSpec((tm, tv), lambda i, j: (i, j)),
        ),
        compiler_params=pltpu.CompilerParams(
            dimension_semantics=("parallel", "parallel"),
            vmem_limit_bytes=_VMEM_LIMIT_BYTES,
        ),
    )(x2d, lse)
    return out2d


# ----------------------------------------------------------------------------
# Public wrapper.
# ----------------------------------------------------------------------------
@functools.partial(jax.jit, static_argnames=("log_probs", "out_dtype"))
def normalized_probs_pallas(logits, log_probs=False, out_dtype=None):
    """Softmax or log-softmax over the last dim of (batch, tgt_len, vocab)."""
    b, t, v = logits.shape
    rows = b * t
    x2d = logits.reshape(rows, v)                 # metadata-only reshape

    out_dt = jnp.dtype(logits.dtype) if out_dtype is None else jnp.dtype(out_dtype)
    in_isz = jnp.dtype(logits.dtype).itemsize
    out_isz = out_dt.itemsize

    tm = _pick_tile_rows(rows, v, in_isz, out_isz, log_probs)
    if tm is None:
        # Very large vocab: chunk the vocab axis so VMEM stays bounded on v7x.
        tm_c, tv_c = _pick_chunked_tiles(rows, v, in_isz, out_isz)
        out2d = _normalized_probs_chunked(x2d, log_probs, out_dt, tm_c, tv_c)
    else:
        kernel = _log_softmax_kernel if log_probs else _softmax_kernel
        out2d = pl.pallas_call(
            kernel,
            out_shape=jax.ShapeDtypeStruct((rows, v), out_dt),
            grid_spec=pltpu.PrefetchScalarGridSpec(
                num_scalar_prefetch=0,
                # Partial last block handled by Pallas (masked store); garbage
                # tail rows feed exp but are never written back.
                grid=(pl.cdiv(rows, tm),),
                in_specs=[pl.BlockSpec((tm, v), lambda i: (i, 0))],
                out_specs=pl.BlockSpec((tm, v), lambda i: (i, 0)),
            ),
            compiler_params=pltpu.CompilerParams(
                dimension_semantics=("parallel",),   # shards rows across v7x TCs
                vmem_limit_bytes=_VMEM_LIMIT_BYTES,
            ),
            cost_estimate=pl.CostEstimate(
                flops=4 * rows * v,
                transcendentals=rows * v,
                bytes_accessed=rows * v * (in_isz + out_isz),
            ),
        )(x2d)

    return out2d.reshape(b, t, v)


class FairseqDecoder:
    """JAX/Pallas port of the fairseq base decoder class."""

    def __init__(self, dictionary):
        self.dictionary = dictionary
        self.onnx_trace = False
        self.adaptive_softmax = None

    def forward(self, prev_output_tokens, encoder_out):
        # TODO(synk): base class forward is abstract in fairseq (NotImplementedError);
        # concrete decoders supply the (batch, tgt_len, vocab) logits.
        raise NotImplementedError

    def prepare_for_onnx_export_(self):
        self.onnx_trace = True

    def get_normalized_probs(self, net_output, log_probs, sample=None):
        """Get normalized probabilities (or log probs) from a net's output."""
        # adaptive_softmax branch not applicable (attribute is always None here).
        logits = net_output[0]
        return normalized_probs_pallas(logits, log_probs=log_probs)

    def max_positions(self):
        return 1000000.0

    def upgrade_state_dict(self, state_dict):
        return state_dict


if __name__ == "__main__":
    key = jax.random.PRNGKey(0)
    decoder = FairseqDecoder(dictionary={"<pad>": 0, "<eos>": 1})

    # --- Case 1: even shapes (batch, tgt_len, vocab) = (2, 8, 256) -----------
    batch, tgt_len, src_len, vocab = 2, 8, 8, 256
    k_logits, k_attn, k2, k3 = jax.random.split(key, 4)
    logits = jax.random.normal(k_logits, (batch, tgt_len, vocab), dtype=jnp.float32)
    attn = jax.random.uniform(k_attn, (batch, tgt_len, src_len), dtype=jnp.float32)
    net_output = (logits, attn)

    probs = decoder.get_normalized_probs(net_output, log_probs=False)
    log_probs = decoder.get_normalized_probs(net_output, log_probs=True)
    jax.block_until_ready(probs)
    jax.block_until_ready(log_probs)

    ref_probs = jax.nn.softmax(logits, axis=-1)
    ref_logp = jax.nn.log_softmax(logits, axis=-1)
    assert probs.shape == (batch, tgt_len, vocab)
    assert log_probs.shape == (batch, tgt_len, vocab)
    assert jnp.allclose(probs, ref_probs, atol=1e-5, rtol=1e-5)
    assert jnp.allclose(jnp.sum(probs, axis=-1), 1.0, atol=1e-4)
    assert jnp.allclose(log_probs, ref_logp, atol=1e-4, rtol=1e-5)

    # --- Case 2: ragged rows (exercises the masked partial last row block) ---
    b2, t2, v2 = 2, 7, 128          # rows = 14, not a multiple of the sublane tile
    logits2 = jax.random.normal(k2, (b2, t2, v2), dtype=jnp.float32)
    probs2 = decoder.get_normalized_probs((logits2, None), log_probs=False)
    logp2 = decoder.get_normalized_probs((logits2, None), log_probs=True)
    jax.block_until_ready(probs2)
    jax.block_until_ready(logp2)
    assert jnp.allclose(probs2, jax.nn.softmax(logits2, axis=-1), atol=1e-5, rtol=1e-5)
    assert jnp.allclose(logp2, jax.nn.log_softmax(logits2, axis=-1), atol=1e-4, rtol=1e-5)

    # --- Case 3: vocab-chunked fallback path (forced small tiles) ------------
    b3, t3, v3 = 2, 7, 300          # rows=14, vocab=300 -> masked vocab tail
    logits3 = jax.random.normal(k3, (b3, t3, v3), dtype=jnp.float32)
    x3 = logits3.reshape(b3 * t3, v3)
    probs3 = _normalized_probs_chunked(x3, False, jnp.dtype(jnp.float32),
                                       tm=8, tv=128).reshape(b3, t3, v3)
    logp3 = _normalized_probs_chunked(x3, True, jnp.dtype(jnp.float32),
                                      tm=8, tv=128).reshape(b3, t3, v3)
    jax.block_until_ready(probs3)
    jax.block_until_ready(logp3)
    assert jnp.allclose(probs3, jax.nn.softmax(logits3, axis=-1), atol=1e-5, rtol=1e-5)
    assert jnp.allclose(logp3, jax.nn.log_softmax(logits3, axis=-1), atol=1e-4, rtol=1e-5)

    # --- Case 4: reduced-precision (bf16) output option -----------------------
    probs_bf16 = normalized_probs_pallas(logits, log_probs=False, out_dtype=jnp.bfloat16)
    jax.block_until_ready(probs_bf16)
    assert probs_bf16.dtype == jnp.bfloat16
    assert jnp.allclose(probs_bf16.astype(jnp.float32), ref_probs, atol=1e-3)

    print("KERNEL_OK")
</pallas_src>

<mosaic_0001>
module attributes {stable_mosaic.version = 11 : i64} {
  func.func @_softmax_kernel(%arg0: i32, %arg1: memref<8x256xf32, #tpu.memory_space<vmem>>, %arg2: memref<8x256xf32, #tpu.memory_space<vmem>>) attributes {dimension_semantics = [#tpu.dimension_semantics<parallel>], iteration_bounds = array<i64: 2>, scalar_prefetch = 0 : i64, scratch_operands = 0 : i64, tpu.core_type = #tpu.core_type<tc>, window_params = [{transform_indices = @transform_0, window_bounds = array<i64: 8, 256>}, {transform_indices = @transform_1, window_bounds = array<i64: 8, 256>}]} {
    %c0 = arith.constant 0 : index
    %c0_0 = arith.constant 0 : index
    %0 = vector.load %arg1[%c0, %c0_0] : memref<8x256xf32, #tpu.memory_space<vmem>>, vector<8x256xf32>
    %cst = arith.constant dense<0xFF800000> : vector<8xf32>
    %1 = vector.multi_reduction <maximumf>, %0, %cst [1] : vector<8x256xf32> to vector<8xf32>
    %2 = vector.shape_cast %1 : vector<8xf32> to vector<8x1xf32>
    %3 = vector.broadcast %2 : vector<8x1xf32> to vector<8x256xf32>
    %4 = arith.subf %0, %3 : vector<8x256xf32>
    %5 = math.exp %4 : vector<8x256xf32>
    %cst_1 = arith.constant dense<0.000000e+00> : vector<8xf32>
    %6 = vector.multi_reduction <add>, %5, %cst_1 [1] : vector<8x256xf32> to vector<8xf32>
    %7 = vector.shape_cast %6 : vector<8xf32> to vector<8x1xf32>
    %8 = vector.broadcast %7 : vector<8x1xf32> to vector<8x256xf32>
    %9 = arith.divf %5, %8 : vector<8x256xf32>
    %c0_2 = arith.constant 0 : index
    %c0_3 = arith.constant 0 : index
    %10 = vector.load %arg2[%c0_2, %c0_3] : memref<8x256xf32, #tpu.memory_space<vmem>>, vector<8x256xf32>
    tpu.vector_store %arg2[%c0_2, %c0_3], %9 {strides = array<i32>} : memref<8x256xf32, #tpu.memory_space<vmem>>, vector<8x256xf32>,
    return
  }
  func.func @transform_0(%arg0: i32) -> (i32, i32) {
    %c0_i32 = arith.constant 0 : i32
    %c0_i32_0 = arith.constant 0 : i32
    return %arg0, %c0_i32 : i32, i32
  }
  func.func @transform_1(%arg0: i32) -> (i32, i32) {
    %c0_i32 = arith.constant 0 : i32
    %c0_i32_0 = arith.constant 0 : i32
    return %arg0, %c0_i32 : i32, i32
  }
}

</mosaic_0001>

<llo_original>
// kernel: normalized_probs_pallas.1
$region0: #{normalized_probs_pallas.1}
  #allocation0 [shape = 'u32[]', space=smem, size = 0x4, offset = 0x4, fixed_abs, tag = 'smem constant byte address 0x4 - core index']
  #allocation1 [shape = 'u32[144,128]{1,0:T(1,128)}', space=vmem, size = 0x12000, scoped, tag = 'internal scratch']
  %s0 = inlined_call_operand.hbm [shape: f32[16,256], index: 0, kind: input, shape index: {}]
  %s1 = inlined_call_operand.hbm [shape: f32[16,256], index: 1, kind: output, shape index: {}]
  %s2 = sld [smem:[#allocation0]]
  $region41: #{normalized_probs_pallas.1} parent=0
    _
  %s4 = ssub.s32 1, %s2
  %s5 = scalar_select 0, %s4, %s2
  $region1: #{normalized_probs_pallas.1} parent=0
    #allocation2 [shape = 'u8[16384]{0}', space=vmem, size = 0x4000, scoped, tag = 'input window, operand 0']
    #allocation3 [shape = 's32[2]{0}', space=sflag, size = 0x8, scoped, tag = 'scoped memory for normalized_probs_pallas.1']
    #allocation4 [shape = 's32[2]{0}', space=sflag, size = 0x8, scoped, tag = 'scoped memory for normalized_probs_pallas.1']
    #allocation5 [shape = 'u8[16384]{0}', space=vmem, size = 0x4000, scoped, tag = 'output window, operand 0']
    %6 = vsyncpa [#allocation3], 0
    %s7 = scalar_lea.sflag [#allocation3], 1
    %8 = vsyncpa %s7, 0
    %9 = vsyncpa [#allocation4], 0
    %s10 = scalar_lea.sflag [#allocation4], 1
    %11 = vsyncpa %s10, 0
    loop: start=0, step=1, limit=4
    $region2: #{normalized_probs_pallas.1} parent=1 // loop_pre_header
      _
    $region3: #{normalized_probs_pallas.1} parent=1 // loop_header
      %s13 = sphi 0, %s17
      %p14 = scmp.ge.s32.totalorder %s13, 4
      %s23 = sphi 0, %s25
      %s26 = sphi 0, %s23
      %s27 = sphi 0, %s26
      %s43 = sphi 0, %s27
      %s49 = sphi 0, %s51
      %s52 = sphi 0, %s49
      %s53 = sphi 0, %s52
      %s69 = sphi 0, %s53
    $region4: #{normalized_probs_pallas.1} parent=1 // loop_header_branch
      %16 = sbr.rel (%p14) target = $region8
    $region5: #{normalized_probs_pallas.1} parent=1 // loop_body
      %s18 = ssub.s32 %s13, 1
      %s19 = ssub.s32 %s13, 2
      %s20 = sadd.s32 %s13, 1
      %s21 = ssub.s32 %s13, %s20
      %p22 = scmp.eq.s32.totalorder %s21, 0
      %s24 = sadd.s32 %s23, 1
      %s25 = scalar_select %p22, %s23, %s24
      %p28 = pneg %p22
      %p29 = scmp.eq.s32.totalorder %s13, 1
      %p30 = por %p28, %p29
      %p31 = scmp.ne.s32.totalorder %s23, %s26
      %p32 = scmp.eq.s32.totalorder %s13, 0
      %p33 = por %p31, %p32
      %p34 = scmp.ne.s32.totalorder %s23, %s26
      %p35 = scmp.eq.s32.totalorder %s18, 1
      %p36 = por %p34, %p35
      %p37 = scmp.ne.s32.totalorder %s26, %s27
      %p38 = scmp.eq.s32.totalorder %s18, 0
      %p39 = por %p37, %p38
      %p40 = scmp.ne.s32.totalorder %s26, %s27
      %p41 = scmp.eq.s32.totalorder %s19, 1
      %p42 = por %p40, %p41
      %p44 = scmp.ne.s32.totalorder %s27, %s43
      %p45 = scmp.eq.s32.totalorder %s19, 0
      %p46 = por %p44, %p45
      %s47 = ssub.s32 %s13, %s20
      %p48 = scmp.eq.s32.totalorder %s47, 0
      %s50 = sadd.s32 %s49, 1
      %s51 = scalar_select %p48, %s49, %s50
      %p54 = pneg %p48
      %p55 = scmp.eq.s32.totalorder %s13, 1
      %p56 = por %p54, %p55
      %p57 = scmp.ne.s32.totalorder %s49, %s52
      %p58 = scmp.eq.s32.totalorder %s13, 0
      %p59 = por %p57, %p58
      %p60 = scmp.ne.s32.totalorder %s49, %s52
      %p61 = scmp.eq.s32.totalorder %s18, 1
      %p62 = por %p60, %p61
      %p63 = scmp.ne.s32.totalorder %s52, %s53
      %p64 = scmp.eq.s32.totalorder %s18, 0
      %p65 = por %p63, %p64
      %p66 = scmp.ne.s32.totalorder %s52, %s53
      %p67 = scmp.eq.s32.totalorder %s19, 1
      %p68 = por %p66, %p67
      %p70 = scmp.ne.s32.totalorder %s53, %s69
      %p71 = scmp.eq.s32.totalorder %s19, 0
      %p72 = por %p70, %p71
      %p73 = scmp.le.s32.totalorder 1, %s13
      %p74 = scmp.lt.s32.totalorder %s13, 3
      %p75 = pnand %p73, %p74
      %p76 = pneg %p75
      // Predicated region
      $region9: #{normalized_probs_pallas.1} parent=5 // pred_check
        _
      $region10: #{normalized_probs_pallas.1} parent=5 // pred_check_branch
        %78 = sbr.rel (%p75) target = $region12
      $region11: #{normalized_probs_pallas.1} parent=5 // pred_region
        %s79 = ssub.s32 %s13, 1
      $region12: #{normalized_probs_pallas.1} parent=5 // pred_fallthru
        _
      %p80 = scmp.lt.s32.totalorder %s13, 2
      // Predicated region
      $region13: #{normalized_probs_pallas.1} parent=5 // pred_check
        %p81 = pneg %p80
      $region14: #{normalized_probs_pallas.1} parent=5 // pred_check_branch
        %83 = sbr.rel (%p81) target = $region16
      $region15: #{normalized_probs_pallas.1} parent=5 // pred_region
        // Predicated region
        $region17: #{normalized_probs_pallas.1} parent=15 // pred_check
          %p84 = pneg %p33
        $region18: #{normalized_probs_pallas.1} parent=15 // pred_check_branch
          %86 = sbr.rel (%p84) target = $region20
        $region19: #{normalized_probs_pallas.1} parent=15 // pred_region
          %s87 = sand.u32 %s23, 1
          %s88 = scalar_lea.sflag [#allocation3], %s87
          %s89 = sand.u32 %s23, 1
          %s90 = smul.addr %s89, 16
          %s91 = scalar_lea.vmem [#allocation2], %s90
          %s93 = ssub.s32 256, 256
          %94 = vsyncadd %s88, %s93
          %s95 = smul.addr %s13, 2
          %s96 = smul.addr %s95, 128
          %s97 = scalar_lea.hbm %s0, %s96
          %s99 = sshll.u32 %s91, 4
          %s100 = int_to_ptr.vmem [resolvable:$true] %s99
          %102 = dma.hbm_to_vmem [thread:$0]  %s97, 256, %s100, %s88
        $region20: #{normalized_probs_pallas.1} parent=15 // pred_fallthru
          _
      $region16: #{normalized_probs_pallas.1} parent=5 // pred_fallthru
        _
      %p103 = scmp.le.s32.totalorder 1, %s13
      %p104 = scmp.lt.s32.totalorder %s13, 3
      %p105 = pnand %p103, %p104
      %p106 = pneg %p105
      // Predicated region
      $region21: #{normalized_probs_pallas.1} parent=5 // pred_check
        _
      $region22: #{normalized_probs_pallas.1} parent=5 // pred_check_branch
        %108 = sbr.rel (%p105) target = $region24
      $region23: #{normalized_probs_pallas.1} parent=5 // pred_region
        %s109 = ssub.s32 %s13, 1
        %s110 = sand.u32 %s26, 1
        %s111 = scalar_lea.sflag [#allocation3], %s110
        %s112 = sand.u32 %s26, 1
        %s113 = smul.addr %s112, 16
        %s114 = scalar_lea.vmem [#allocation2], %s113
        // Predicated region
        $region25: #{normalized_probs_pallas.1} parent=23 // pred_check
          %p115 = pneg %p39
        $region26: #{normalized_probs_pallas.1} parent=23 // pred_check_branch
          %117 = sbr.rel (%p115) target = $region28
        $region27: #{normalized_probs_pallas.1} parent=23 // pred_region
          %118 = dma.done %s111, 256
        $region28: #{normalized_probs_pallas.1} parent=23 // pred_fallthru
          _
        %s119 = sand.u32 %s26, 1
        %s120 = scalar_lea.sflag [#allocation3], %s119
        %s121 = sand.u32 %s26, 1
        %s122 = smul.addr %s121, 16
        %s123 = scalar_lea.vmem [#allocation2], %s122
        %p124 = pneg %p39
        %p125 = pneg %p36
        %p126 = pneg %p65
        %p127 = pneg %p62
        %s128 = sand.u32 %s52, 1
        %s129 = scalar_lea.sflag [#allocation4], %s128
        %s130 = sand.u32 %s52, 1
        %s131 = smul.addr %s130, 16
        %s132 = scalar_lea.vmem [#allocation5], %s131
        %v133 = vld [vmem:[%s114] sm:$0xff]
        %v134 = vld [vmem:[%s114 + $0x8] sm:$0xff]
        %v135 = vmax.f32 %v133, %v134
        %136 = vmax.xlane.f32.xlu0 %v135
        %v137 = vpop.xlane.xlu0 %136
        %v138 = vsub.f32 %v133, %v137
        %v139 = vsub.f32 %v134, %v137
        %v140 = vmul.f32 %v138, 1.442695
        %v141 = vpow.pop %v140
        %v142 = vmul.f32 %v139, 1.442695
        %v143 = vpow.pop %v142
        %v144 = vadd.f32 %v141, %v143
        %145 = vadd.xlane.f32.xlu0 %v144
        %v146 = vpop.xlane.xlu0 %145
        %v147 = vrcp.pop %v146
        %v148 = vmul.f32 %v141, %v147
        %v149 = vmul.f32 %v143, %v147
        %150 = vst [vmem:[%s132] sm:$0xff] %v148
        %151 = vst [vmem:[%s132 + $0x8] sm:$0xff] %v149
        %s152 = sand.u32 %s52, 1
        %s153 = scalar_lea.sflag [#allocation4], %s152
        %s154 = sand.u32 %s52, 1
        %s155 = smul.addr %s154, 16
        %s156 = scalar_lea.vmem [#allocation5], %s155
        // Predicated region
        $region29: #{normalized_probs_pallas.1} parent=23 // pred_check
          %p157 = pneg %p62
        $region30: #{normalized_probs_pallas.1} parent=23 // pred_check_branch
          %159 = sbr.rel (%p157) target = $region32
        $region31: #{normalized_probs_pallas.1} parent=23 // pred_region
          %s161 = ssub.s32 256, 256
          %162 = vsyncadd %s153, %s161
          %s163 = smul.addr %s18, 2
          %s164 = smul.addr %s163, 128
          %s165 = scalar_lea.hbm %s1, %s164
          %s167 = sshll.u32 %s156, 4
          %s168 = int_to_ptr.vmem [resolvable:$true] %s167
          %170 = dma.vmem_to_hbm [thread:$0]  %s168, 256, %s165, %s153
        $region32: #{normalized_probs_pallas.1} parent=23 // pred_fallthru
          _
      $region24: #{normalized_probs_pallas.1} parent=5 // pred_fallthru
        _
      %p171 = scmp.le.s32.totalorder 2, %s13
      // Predicated region
      $region33: #{normalized_probs_pallas.1} parent=5 // pred_check
        %p172 = pneg %p171
      $region34: #{normalized_probs_pallas.1} parent=5 // pred_check_branch
        %174 = sbr.rel (%p172) target = $region36
      $region35: #{normalized_probs_pallas.1} parent=5 // pred_region
        %s175 = ssub.s32 %s13, 2
        // Predicated region
        $region37: #{normalized_probs_pallas.1} parent=35 // pred_check
          %p176 = pneg %p68
        $region38: #{normalized_probs_pallas.1} parent=35 // pred_check_branch
          %178 = sbr.rel (%p176) target = $region40
        $region39: #{normalized_probs_pallas.1} parent=35 // pred_region
          %s179 = sand.u32 %s53, 1
          %s180 = scalar_lea.sflag [#allocation4], %s179
          %s181 = sand.u32 %s53, 1
          %s182 = smul.addr %s181, 16
          %s183 = scalar_lea.vmem [#allocation5], %s182
          %184 = dma.done %s180, 256
        $region40: #{normalized_probs_pallas.1} parent=35 // pred_fallthru
          _
      $region36: #{normalized_probs_pallas.1} parent=5 // pred_fallthru
        _
    $region6: #{normalized_probs_pallas.1} parent=1 // loop_footer
      %s17 = sadd.s32 1, %s13
    $region7: #{normalized_probs_pallas.1} parent=1 // loop_footer_branch
      %12 = sbr.rel target = $region3
    $region8: #{normalized_probs_pallas.1} parent=1 // loop_exit
      _
    %185 = vsyncpa [#allocation3], 1
    %s186 = scalar_lea.sflag [#allocation3], 1
    %187 = vsyncpa %s186, 1
    %188 = vsyncpa [#allocation4], 1
    %s189 = scalar_lea.sflag [#allocation4], 1
    %190 = vsyncpa %s189, 1

</llo_original>
